<compile_context>
chip_gen: v6e
topology: v6e:2x2x1
jax: 0.10.0
libtpu: 0.0.40
codegen_flags: <defaults>
</compile_context>

<pallas_src>
import math
import functools

import jax
import jax.numpy as jnp
from jax.experimental import pallas as pl
from jax.experimental.pallas import tpu as pltpu


_ENABLE_BUFFERED = True   # toggled off by the __main__ fallback if unsupported


def _round_up(x, m):
    return ((x + m - 1) // m) * m


def _vmem_cap_bytes():
    """Usable scoped-VMEM cap per TensorCore, generation-aware with headroom."""
    try:
        cap = int(pltpu.get_tpu_info().vmem_capacity_bytes)
    except Exception:
        cap = 64 * 1024 * 1024           # conservative (v7x-sized) fallback
    # leave ~20% for compiler-internal scratch / double buffers:
    #   v7x (64 MiB)  -> ~51 MiB ; v5e/v6e (128 MiB) -> ~102 MiB
    return max(int(0.8 * cap), 32 * 1024 * 1024)


def _vmem_limit(nbytes):
    return int(min(_vmem_cap_bytes(), max(int(1.5 * nbytes), 8 * 1024 * 1024)))


def _bspec(shape, index_map, n_buf=None):
    """BlockSpec with optional explicit buffer count (single-buffer constants)."""
    if n_buf is not None and _ENABLE_BUFFERED and hasattr(pl, "Buffered"):
        try:
            return pl.BlockSpec(shape, index_map, pipeline_mode=pl.Buffered(n_buf))
        except TypeError:      # BlockSpec without pipeline_mode: fall back
            pass
    return pl.BlockSpec(shape, index_map)


# ----------------------------------------------------------------------------
# Pallas kernel 1: lane-dense transposed matmul + bias + activation (conv path)
# ----------------------------------------------------------------------------
def _matmul_bias_act_kernel(w_ref, x_ref, b_ref, o_ref, *, act):
    # (Cout, K) @ (K, tm) -> (Cout, tm); M on the lane axis => unmasked stores.
    y = jnp.dot(w_ref[...], x_ref[...], preferred_element_type=jnp.float32)
    y = y + b_ref[...]                      # (Cout, 1) broadcasts across lanes
    if act == "relu":
        y = jnp.maximum(y, 0.0)
    elif act == "hardtanh_pi":
        y = jnp.clip(y, -math.pi, math.pi)
    o_ref[...] = y.astype(o_ref.dtype)


def matmul_bias_act_T(xT, w, b, act="none", tm=2048, out_dtype=jnp.float32,
                      compute_dtype=jnp.bfloat16):
    """xT: (K, M) im2col patches (lane-dense M); w: (Cout, K); b: (Cout,).
    Returns (Cout, M) out_dtype. Tiled over M, grid-parallel (megacore-shardable)."""
    K, M = xT.shape
    Cout, K2 = w.shape
    assert K == K2
    tm = min(tm, _round_up(M, 128))              # tile = multiple of 128 lanes
    M_pad = _round_up(M, tm)
    if M_pad != M:
        xT = jnp.pad(xT, ((0, 0), (0, M_pad - M)))
    xT = xT.astype(compute_dtype)                # no-op when already bf16
    wm = w.astype(compute_dtype)
    b2 = b.reshape(Cout, 1).astype(jnp.float32)

    n_steps = M_pad // tm
    n_buf_x = 3 if n_steps > 2 else None         # deeper pipelining when streaming

    blk_bytes = (3 * K * tm * 2                              # streamed x tiles (bf16)
                 + 2 * Cout * tm * jnp.dtype(out_dtype).itemsize
                 + Cout * tm * 4                             # f32 accumulator
                 + Cout * K * 2 + Cout * 4)                  # resident weights + bias

    out = pl.pallas_call(
        functools.partial(_matmul_bias_act_kernel, act=act),
        out_shape=jax.ShapeDtypeStruct((Cout, M_pad), out_dtype),
        grid=(n_steps,),
        in_specs=[
            _bspec((Cout, K), lambda i: (0, 0), n_buf=1),       # constant weights
            _bspec((K, tm), lambda i: (0, i), n_buf=n_buf_x),   # streamed patches
            _bspec((Cout, 1), lambda i: (0, 0), n_buf=1),       # constant bias
        ],
        out_specs=pl.BlockSpec((Cout, tm), lambda i: (0, i)),
        compiler_params=pltpu.CompilerParams(
            dimension_semantics=("parallel",),
            vmem_limit_bytes=_vmem_limit(blk_bytes)),
    )(wm, xT, b2)
    return out[:, :M]


def conv3x3_cnhw(x, w, b, act, out_dtype=jnp.float32):
    """x: (Cin, N, H, W) CNHW; w: (Cout, Cin, 3, 3); b: (Cout,). padding=1, stride=1.
    Returns (Cout, N, H, W) CNHW — no layout transposes between chained convs."""
    # TODO(synk): fuse conv1(ReLU)+conv2(Hardtanh) into one row-tiled Pallas kernel
    # with a 1-row halo to kill the 9x im2col HBM expansion entirely.
    Cin, N, H, W = x.shape
    Cout = w.shape[0]
    xp = jnp.pad(x.astype(jnp.bfloat16), ((0, 0), (0, 0), (1, 1), (1, 1)))
    patches = [xp[:, :, i:i + H, j:j + W] for i in range(3) for j in range(3)]
    cols = jnp.stack(patches, axis=1)                 # (Cin, 9, N, H, W), bf16
    colsT = cols.reshape(Cin * 9, N * H * W)          # (K, M) lane-dense, no transpose
    wmat = w.reshape(Cout, Cin * 9)                   # (Cout, K); K order = (cin, kh, kw)
    yT = matmul_bias_act_T(colsT, wmat, b, act=act, out_dtype=out_dtype)
    return yT.reshape(Cout, N, H, W)


# ----------------------------------------------------------------------------
# Pallas kernel 2: fused polar_to_rect -> ASM propagation (tiled DFT matmuls)
#                  -> rect_to_polar
# ----------------------------------------------------------------------------
def _atan2(y, x):
    # atan2 from mul/add/min/max/where + EUP reciprocal (odd-poly atan, A&S 4.4.49).
    ax = jnp.abs(x)
    ay = jnp.abs(y)
    mx = jnp.maximum(ax, ay)
    mn = jnp.minimum(ax, ay)
    t = mn * pl.reciprocal(jnp.maximum(mx, 1e-30), approx=True)   # EUP slot
    t2 = t * t
    a = t * (0.9998660 + t2 * (-0.3302995 + t2 * (0.1801410
             + t2 * (-0.0851330 + t2 * 0.0208351))))
    a = jnp.where(ay > ax, (math.pi / 2.0) - a, a)
    a = jnp.where(x < 0.0, math.pi - a, a)
    a = jnp.where(y < 0.0, -a, a)
    return a


def _asm_prop_kernel(amp_ref, ph_ref, a_ref, at_ref, h_ref, b_ref, bt_ref,
                     amp_o_ref, ang_o_ref,
                     xr_ref, xi_ref, acc_r_ref, acc_i_ref):
    t = pl.program_id(1)
    n_t = pl.num_programs(1)

    @pl.when(t == 0)
    def _():
        # polar_to_rect once per batch item; accumulator init.
        amp = amp_ref[...]
        ph = ph_ref[...]
        xr_ref[...] = (amp * jnp.cos(ph)).astype(xr_ref.dtype)
        xi_ref[...] = (amp * jnp.sin(ph)).astype(xi_ref.dtype)
        acc_r_ref[...] = jnp.zeros_like(acc_r_ref)
        acc_i_ref[...] = jnp.zeros_like(acc_i_ref)

    def cmm(pr, pi, qr, qi):
        # Gauss 3-multiplication complex matmul: bf16 operands, f32 accumulation.
        # (default MXU precision rounds f32 operands to bf16 anyway; switch to
        #  precision=HIGHEST if bit-level parity with a jnp.fft reference is needed)
        pr = pr.astype(jnp.bfloat16)
        pi = pi.astype(jnp.bfloat16)
        qr = qr.astype(jnp.bfloat16)
        qi = qi.astype(jnp.bfloat16)
        p1 = jnp.dot(pr, qr, preferred_element_type=jnp.float32)
        p2 = jnp.dot(pi, qi, preferred_element_type=jnp.float32)
        p3 = jnp.dot(pr + pi, qr + qi, preferred_element_type=jnp.float32)
        return p1 - p2, p3 - p1 - p2

    # stage 1: forward DFT rows of this Np-tile (pad+ifftshift+ortho scale in A)
    tr, ti = cmm(a_ref[0], a_ref[1], xr_ref[...], xi_ref[...])     # (tNp, W)
    # stage 2: complete the 2-D forward DFT for these padded-grid rows
    u1r, u1i = cmm(tr, ti, at_ref[0], at_ref[1])                   # (tNp, Np)
    # stage 3: transfer function (same Np-row tile)
    hr = h_ref[0].astype(jnp.float32)
    hi = h_ref[1].astype(jnp.float32)
    u2r = hr * u1r - hi * u1i
    u2i = hr * u1i + hi * u1r
    # stage 4: partial inverse DFT, accumulated over Np-tiles (K-tiled contraction)
    sr, si = cmm(b_ref[0], b_ref[1], u2r, u2i)                     # (H, Np)
    acc_r_ref[...] += sr
    acc_i_ref[...] += si

    @pl.when(t == n_t - 1)
    def _():
        # stage 5: finish inverse DFT (fftshift+crop+ortho scale in B/BT) + polar
        outr, outi = cmm(acc_r_ref[...], acc_i_ref[...], bt_ref[0], bt_ref[1])
        amp_o_ref[...] = jnp.sqrt(outr * outr + outi * outi)
        ang_o_ref[...] = _atan2(outi, outr)


def _pack_ri(z, dtype=jnp.bfloat16):
    # bf16 storage: halves constant VMEM/HBM bytes; MXU default precision is bf16
    # anyway so the DFT accuracy is essentially unchanged.
    return jnp.stack([jnp.real(z), jnp.imag(z)], axis=0).astype(dtype)


def make_prop_matrices(H, W):
    """Fold pad/ifftshift (+fwd ortho scale) into the forward DFT matrix and
    fftshift/crop (+inv ortho scale) into the inverse DFT matrix."""
    assert H == W, "square fields assumed"
    Np = 2 * H                       # linear_conv=True doubles the field
    assert Np % 2 == 0               # roll(Np//2) == fft/ifftshift only for even Np
    pad = (Np - H) // 2
    n = jnp.arange(Np)
    F = jnp.exp(-2j * jnp.pi * jnp.outer(n, n) / Np).astype(jnp.complex64)
    A = jnp.roll(F, Np // 2, axis=1)          # F @ P_ifftshift
    Ain = A[:, pad:pad + H]                   # centered zero-pad folded    (Np, H)
    G = jnp.conj(F)
    B = jnp.roll(G, Np // 2, axis=0)          # P_fftshift @ conj(F)
    Bout = B[pad:pad + H, :]                  # centered crop folded        (H, Np)

    s = 1.0 / float(Np)                       # 2-D ortho FFT / IFFT scale on (Np, Np)
    mats = dict(A=_pack_ri(Ain * s),          # fwd ortho scale baked in
                AT=_pack_ri(Ain.T),
                B=_pack_ri(Bout * s),         # inv ortho scale baked in
                BT=_pack_ri(Bout.T))
    return mats, Np


def make_precomputed_H(Np, feature_size, wavelength, z):
    """ASM transfer function on the padded grid (this is the preHb forward input)."""
    fx = jnp.fft.fftfreq(Np, d=feature_size[0]).astype(jnp.float32)
    fy = jnp.fft.fftfreq(Np, d=feature_size[1]).astype(jnp.float32)
    FY, FX = jnp.meshgrid(fy, fx, indexing="ij")
    arg = (1.0 / wavelength) ** 2 - FX ** 2 - FY ** 2
    kz = 2.0 * jnp.pi * jnp.sqrt(jnp.maximum(arg, 0.0))
    return jnp.where(arg > 0, jnp.exp(1j * kz * z), 0.0 + 0.0j).astype(jnp.complex64)


def _asm_vmem_bytes(H, W, Np, tNp):
    bf = 2   # bf16
    const = (2 * H * Np * bf + 2 * Np * H * bf                       # AT, BT (1 buffer)
             + 2 * (2 * tNp * H + 2 * tNp * Np + 2 * H * tNp) * bf)  # tiled A/Hp/B (<=2)
    io = 2 * (2 * H * W * 4) + 2 * (2 * H * W * 4)                   # amp/ph + amp/ang
    scratch = 2 * H * W * bf + 2 * H * Np * 4                        # xr/xi + accumulators
    # Gauss temporaries of the (tNp, Np) stages plus the finalize stage included.
    inter = 4 * (16 * tNp * Np + 6 * tNp * W + 16 * H * Np)
    return const + io + scratch + inter


def _pick_np_tile(H, W, Np, cap):
    """Largest tile of the padded Np axis that fits the VMEM budget.  Prefers the
    whole field (single grid step; best on v5e/v6e); falls back to 128-multiples
    that divide Np when the whole-field footprint exceeds the cap (v7x / large H)."""
    cands = [Np]
    for k in range(Np // 128, 0, -1):
        t = k * 128
        if Np % t == 0 and t != Np:
            cands.append(t)
    for t in cands:
        if _asm_vmem_bytes(H, W, Np, t) <= cap:
            return t
    return cands[-1]


def asm_propagate_polar(amp, ph, Hc, mats):
    """amp, ph: (N, H, W) real fields -> (amp_out, ang_out) each (N, H, W)."""
    N, H, W = amp.shape
    Np = Hc.shape[0]
    amp = amp.astype(jnp.float32)
    ph = ph.astype(jnp.float32)
    Hp = _pack_ri(Hc)                                     # (2, Np, Np) bf16
    A, AT, B, BT = mats["A"], mats["AT"], mats["B"], mats["BT"]

    cap = _vmem_cap_bytes()
    tNp = _pick_np_tile(H, W, Np, cap)
    n_t = Np // tNp
    n_buf_tiled = 1 if n_t == 1 else None        # single-buffer when not streaming

    est = _asm_vmem_bytes(H, W, Np, tNp)
    vmem_limit = int(min(cap, max(int(1.25 * est), 8 * 1024 * 1024)))

    amp_out, ang_out = pl.pallas_call(
        _asm_prop_kernel,
        out_shape=(jax.ShapeDtypeStruct((N, H, W), jnp.float32),
                   jax.ShapeDtypeStruct((N, H, W), jnp.float32)),
        grid=(N, n_t),
        in_specs=[
            pl.BlockSpec((None, H, W), lambda b, t: (b, 0, 0)),
            pl.BlockSpec((None, H, W), lambda b, t: (b, 0, 0)),
            _bspec((2, tNp, H), lambda b, t: (0, t, 0), n_buf=n_buf_tiled),   # A rows
            _bspec((2, H, Np), lambda b, t: (0, 0, 0), n_buf=1),              # A^T
            _bspec((2, tNp, Np), lambda b, t: (0, t, 0), n_buf=n_buf_tiled),  # H rows
            _bspec((2, H, tNp), lambda b, t: (0, 0, t), n_buf=n_buf_tiled),   # B cols
            _bspec((2, Np, H), lambda b, t: (0, 0, 0), n_buf=1),              # B^T
        ],
        out_specs=(pl.BlockSpec((None, H, W), lambda b, t: (b, 0, 0)),
                   pl.BlockSpec((None, H, W), lambda b, t: (b, 0, 0))),
        scratch_shapes=[
            pltpu.VMEM((H, W), jnp.bfloat16),    # xr (polar_to_rect, once per item)
            pltpu.VMEM((H, W), jnp.bfloat16),    # xi
            pltpu.VMEM((H, Np), jnp.float32),    # accumulator (real)
            pltpu.VMEM((H, Np), jnp.float32),    # accumulator (imag)
        ],
        compiler_params=pltpu.CompilerParams(
            # batch axis shards across TensorCores; Np-tile axis accumulates.
            # TODO(synk): for N=1 on v7x, split the finalize inverse-DFT over a
            # second parallel axis so both TensorCores stay busy.
            dimension_semantics=("parallel", "arbitrary"),
            vmem_limit_bytes=vmem_limit),
    )(amp, ph, A, AT, Hp, B, BT)
    return amp_out, ang_out


# ----------------------------------------------------------------------------
# Full forward (mirrors HoloZonePlateNet.forward)
# ----------------------------------------------------------------------------
def holo_forward(params, target, trush, preH, prop_mats):
    N, _, H, W = target.shape
    # init_phase = initial_phase(cat(target, trush, dim=1)); CNHW layout throughout.
    x = jnp.stack([target[:, 0], trush[:, 0]], axis=0)               # (2, N, H, W)
    h = conv3x3_cnhw(x, params["ip_w1"], params["ip_b1"], act="relu",
                     out_dtype=jnp.bfloat16)                         # bf16 hidden
    init_phase = conv3x3_cnhw(h, params["ip_w2"], params["ip_b2"],
                              act="hardtanh_pi")                     # (1, N, H, W) f32

    # polar_to_rect + propagation_ASM(..., -distance, precomped_H=preH) + rect_to_polar
    amp, ang = asm_propagate_polar(target[:, 0], init_phase[0], preH, prop_mats)

    # slm_amp_phase = cat((amp, ang), dim=-3); ret = final_phase_only(slm_amp_phase)
    slm_amp_phase = jnp.stack([amp, ang], axis=0)                    # (2, N, H, W)
    h2 = conv3x3_cnhw(slm_amp_phase, params["fp_w1"], params["fp_b1"], act="relu",
                      out_dtype=jnp.bfloat16)
    ret = conv3x3_cnhw(h2, params["fp_w2"], params["fp_b2"], act="hardtanh_pi")
    # (1, N, H, W) -> (N, 1, H, W) is a pure reshape (leading channel dim is 1).
    return ret.reshape(N, 1, H, W)


def init_params(key, num_features_init=16):
    def conv_init(k, cout, cin):
        fan_in = cin * 9
        w = jax.random.normal(k, (cout, cin, 3, 3), jnp.float32) / math.sqrt(fan_in)
        b = jnp.zeros((cout,), jnp.float32)
        return w, b

    k1, k2, k3, k4 = jax.random.split(key, 4)
    ip_w1, ip_b1 = conv_init(k1, num_features_init, 2)
    ip_w2, ip_b2 = conv_init(k2, 1, num_features_init)
    fp_w1, fp_b1 = conv_init(k3, num_features_init, 2)
    fp_w2, fp_b2 = conv_init(k4, 1, num_features_init)
    return dict(ip_w1=ip_w1, ip_b1=ip_b1, ip_w2=ip_w2, ip_b2=ip_b2,
                fp_w1=fp_w1, fp_b1=fp_b1, fp_w2=fp_w2, fp_b2=fp_b2)


if __name__ == "__main__":
    N, H, W = 2, 16, 16
    feature_size = (6.4e-06, 6.4e-06)
    wavelength = 5.2e-07
    distance_box = [0.05, 0.10]
    ikk = 0

    key = jax.random.PRNGKey(0)
    kp, kt, ku = jax.random.split(key, 3)
    params = init_params(kp, num_features_init=16)

    # target amplitude in [0, 1), trush auxiliary channel
    target = jax.random.uniform(kt, (N, 1, H, W), jnp.float32)
    trush = jax.random.uniform(ku, (N, 1, H, W), jnp.float32)

    prop_mats, Np = make_prop_matrices(H, W)
    preHb = make_precomputed_H(Np, feature_size, wavelength, z=-distance_box[ikk])

    try:
        out = holo_forward(params, target, trush, preHb, prop_mats)
        out = jax.block_until_ready(out)
    except Exception:
        # Fallback: if pipeline_mode=pl.Buffered(...) is rejected by this jax/Mosaic
        # build, retry with default double-buffered operands (same semantics).
        _ENABLE_BUFFERED = False
        out = holo_forward(params, target, trush, preHb, prop_mats)
        out = jax.block_until_ready(out)

    assert out.shape == (N, 1, H, W)
    assert bool(jnp.all(jnp.isfinite(out)))
    print("KERNEL_OK")
</pallas_src>

<mosaic_0001>
module attributes {stable_mosaic.version = 11 : i64} {
  func.func @_matmul_bias_act_kernel(%arg0: i32, %arg1: memref<16x18xbf16, #tpu.memory_space<vmem>>, %arg2: memref<18x512xbf16, #tpu.memory_space<vmem>>, %arg3: memref<16x1xf32, #tpu.memory_space<vmem>>, %arg4: memref<16x512xbf16, #tpu.memory_space<vmem>>) attributes {dimension_semantics = [#tpu.dimension_semantics<parallel>], iteration_bounds = array<i64: 1>, scalar_prefetch = 0 : i64, scratch_operands = 0 : i64, tpu.core_type = #tpu.core_type<tc>, window_params = [{pipeline_mode = #tpu.pipeline_mode<synchronous>, transform_indices = @transform_0, window_bounds = array<i64: 16, 18>}, {transform_indices = @transform_1, window_bounds = array<i64: 18, 512>}, {pipeline_mode = #tpu.pipeline_mode<synchronous>, transform_indices = @transform_2, window_bounds = array<i64: 16, 1>}, {transform_indices = @transform_3, window_bounds = array<i64: 16, 512>}]} {
    %c0 = arith.constant 0 : index
    %c0_0 = arith.constant 0 : index
    %0 = vector.load %arg1[%c0, %c0_0] : memref<16x18xbf16, #tpu.memory_space<vmem>>, vector<16x18xbf16>
    %c0_1 = arith.constant 0 : index
    %c0_2 = arith.constant 0 : index
    %1 = vector.load %arg2[%c0_1, %c0_2] : memref<18x512xbf16, #tpu.memory_space<vmem>>, vector<18x512xbf16>
    %cst = arith.constant dense<0.000000e+00> : vector<16x512xf32>
    %2 = tpu.matmul %0, %1, %cst {dimension_numbers = #tpu.dot_dimension_numbers<[1], [0], [0], [1], [0, 0, 1, 1], [], []>} : vector<16x18xbf16>, vector<18x512xbf16>, vector<16x512xf32> -> vector<16x512xf32>
    %c0_3 = arith.constant 0 : index
    %c0_4 = arith.constant 0 : index
    %3 = vector.load %arg3[%c0_3, %c0_4] : memref<16x1xf32, #tpu.memory_space<vmem>>, vector<16x1xf32>
    %4 = vector.broadcast %3 : vector<16x1xf32> to vector<16x512xf32>
    %5 = arith.addf %2, %4 : vector<16x512xf32>
    %cst_5 = arith.constant 0.000000e+00 : f32
    %6 = vector.broadcast %cst_5 : f32 to vector<16x512xf32>
    %7 = arith.maximumf %5, %6 : vector<16x512xf32>
    %8 = arith.truncf %7 : vector<16x512xf32> to vector<16x512xbf16>
    %c0_6 = arith.constant 0 : index
    %c0_7 = arith.constant 0 : index
    %9 = vector.load %arg4[%c0_6, %c0_7] : memref<16x512xbf16, #tpu.memory_space<vmem>>, vector<16x512xbf16>
    tpu.vector_store %arg4[%c0_6, %c0_7], %8 {strides = array<i32>} : memref<16x512xbf16, #tpu.memory_space<vmem>>, vector<16x512xbf16>,
    return
  }
  func.func @transform_0(%arg0: i32) -> (i32, i32) {
    %c0_i32 = arith.constant 0 : i32
    %c0_i32_0 = arith.constant 0 : i32
    %c0_i32_1 = arith.constant 0 : i32
    return %c0_i32, %c0_i32_0 : i32, i32
  }
  func.func @transform_1(%arg0: i32) -> (i32, i32) {
    %c0_i32 = arith.constant 0 : i32
    %c0_i32_0 = arith.constant 0 : i32
    return %c0_i32, %arg0 : i32, i32
  }
  func.func @transform_2(%arg0: i32) -> (i32, i32) {
    %c0_i32 = arith.constant 0 : i32
    %c0_i32_0 = arith.constant 0 : i32
    %c0_i32_1 = arith.constant 0 : i32
    return %c0_i32, %c0_i32_0 : i32, i32
  }
  func.func @transform_3(%arg0: i32) -> (i32, i32) {
    %c0_i32 = arith.constant 0 : i32
    %c0_i32_0 = arith.constant 0 : i32
    return %c0_i32, %arg0 : i32, i32
  }
}

module attributes {stable_mosaic.version = 11 : i64} {
  func.func @_matmul_bias_act_kernel(%arg0: i32, %arg1: memref<16x18xbf16, #tpu.memory_space<vmem>>, %arg2: memref<18x512xbf16, #tpu.memory_space<vmem>>, %arg3: memref<16x1xf32, #tpu.memory_space<vmem>>, %arg4: memref<16x512xbf16, #tpu.memory_space<vmem>>) attributes {dimension_semantics = [#tpu.dimension_semantics<parallel>], iteration_bounds = array<i64: 1>, scalar_prefetch = 0 : i64, scratch_operands = 0 : i64, tpu.core_type = #tpu.core_type<tc>, window_params = [{pipeline_mode = #tpu.pipeline_mode<synchronous>, transform_indices = @transform_0, window_bounds = array<i64: 16, 18>}, {transform_indices = @transform_1, window_bounds = array<i64: 18, 512>}, {pipeline_mode = #tpu.pipeline_mode<synchronous>, transform_indices = @transform_2, window_bounds = array<i64: 16, 1>}, {transform_indices = @transform_3, window_bounds = array<i64: 16, 512>}]} {
    %c0 = arith.constant 0 : index
    %c0_0 = arith.constant 0 : index
    %0 = vector.load %arg1[%c0, %c0_0] : memref<16x18xbf16, #tpu.memory_space<vmem>>, vector<16x18xbf16>
    %c0_1 = arith.constant 0 : index
    %c0_2 = arith.constant 0 : index
    %1 = vector.load %arg2[%c0_1, %c0_2] : memref<18x512xbf16, #tpu.memory_space<vmem>>, vector<18x512xbf16>
    %cst = arith.constant dense<0.000000e+00> : vector<16x512xf32>
    %2 = tpu.matmul %0, %1, %cst {dimension_numbers = #tpu.dot_dimension_numbers<[1], [0], [0], [1], [0, 0, 1, 1], [], []>} : vector<16x18xbf16>, vector<18x512xbf16>, vector<16x512xf32> -> vector<16x512xf32>
    %c0_3 = arith.constant 0 : index
    %c0_4 = arith.constant 0 : index
    %3 = vector.load %arg3[%c0_3, %c0_4] : memref<16x1xf32, #tpu.memory_space<vmem>>, vector<16x1xf32>
    %4 = vector.broadcast %3 : vector<16x1xf32> to vector<16x512xf32>
    %5 = arith.addf %2, %4 : vector<16x512xf32>
    %cst_5 = arith.constant 0.000000e+00 : f32
    %6 = vector.broadcast %cst_5 : f32 to vector<16x512xf32>
    %7 = arith.maximumf %5, %6 : vector<16x512xf32>
    %8 = arith.truncf %7 : vector<16x512xf32> to vector<16x512xbf16>
    %c0_6 = arith.constant 0 : index
    %c0_7 = arith.constant 0 : index
    %9 = vector.load %arg4[%c0_6, %c0_7] : memref<16x512xbf16, #tpu.memory_space<vmem>>, vector<16x512xbf16>
    tpu.vector_store %arg4[%c0_6, %c0_7], %8 {strides = array<i32>} : memref<16x512xbf16, #tpu.memory_space<vmem>>, vector<16x512xbf16>,
    return
  }
  func.func @transform_0(%arg0: i32) -> (i32, i32) {
    %c0_i32 = arith.constant 0 : i32
    %c0_i32_0 = arith.constant 0 : i32
    %c0_i32_1 = arith.constant 0 : i32
    return %c0_i32, %c0_i32_0 : i32, i32
  }
  func.func @transform_1(%arg0: i32) -> (i32, i32) {
    %c0_i32 = arith.constant 0 : i32
    %c0_i32_0 = arith.constant 0 : i32
    return %c0_i32, %arg0 : i32, i32
  }
  func.func @transform_2(%arg0: i32) -> (i32, i32) {
    %c0_i32 = arith.constant 0 : i32
    %c0_i32_0 = arith.constant 0 : i32
    %c0_i32_1 = arith.constant 0 : i32
    return %c0_i32, %c0_i32_0 : i32, i32
  }
  func.func @transform_3(%arg0: i32) -> (i32, i32) {
    %c0_i32 = arith.constant 0 : i32
    %c0_i32_0 = arith.constant 0 : i32
    return %c0_i32, %arg0 : i32, i32
  }
}

</mosaic_0001>

<llo_original>
// kernel: tpu_custom_call.1
$region0: #{tpu_custom_call.1}
  #allocation0 [shape = 'u32[]', space=smem, size = 0x4, offset = 0x4, fixed_abs, tag = 'smem constant byte address 0x4 - core index']
  #allocation1 [shape = 'u32[144,128]{1,0:T(1,128)}', space=vmem, size = 0x12000, scoped, tag = 'internal scratch']
  %s0 = inlined_call_operand.vmem [shape: bf16[16,18], index: 0, kind: input, shape index: {}]
  %s1 = inlined_call_operand.hbm [shape: bf16[18,512], index: 1, kind: input, shape index: {}]
  %s2 = inlined_call_operand.vmem [shape: f32[16,1], index: 2, kind: input, shape index: {}]
  %s3 = inlined_call_operand.hbm [shape: bf16[16,512], index: 3, kind: output, shape index: {}]
  %s4 = sld [smem:[#allocation0]]
  $region26: #{tpu_custom_call.1} parent=0
    _
  %s6 = ssub.s32 1, %s4
  %s7 = scalar_select 0, %s6, %s4
  $region1: #{tpu_custom_call.1} parent=0
    #allocation2 [shape = 'u8[24576]{0}', space=vmem, size = 0x6000, scoped, tag = 'input window, operand 1, single buffered']
    #allocation3 [shape = 's32[1]{0}', space=sflag, size = 0x4, scoped, tag = 'scoped memory for tpu_custom_call.1']
    #allocation4 [shape = 's32[1]{0}', space=sflag, size = 0x4, scoped, tag = 'scoped memory for tpu_custom_call.1']
    #allocation5 [shape = 'u8[16384]{0}', space=vmem, size = 0x4000, scoped, tag = 'output window, operand 0, single buffered']
    %8 = vsyncpa [#allocation3], 0
    %9 = vsyncpa [#allocation4], 0
    // Predicated region
    $region2: #{tpu_custom_call.1} parent=1 // pred_check
      _
    $region3: #{tpu_custom_call.1} parent=1 // pred_check_branch
      %11 = sbr.rel (0) target = $region5
    $region4: #{tpu_custom_call.1} parent=1 // pred_region
      _
    $region5: #{tpu_custom_call.1} parent=1 // pred_fallthru
      _
    // Predicated region
    $region6: #{tpu_custom_call.1} parent=1 // pred_check
      _
    $region7: #{tpu_custom_call.1} parent=1 // pred_check_branch
      %13 = sbr.rel (0) target = $region9
    $region8: #{tpu_custom_call.1} parent=1 // pred_region
      %s15 = ssub.s32 768, 768
      %16 = vsyncadd [#allocation3], %s15
      %s17 = sshll.u32 [#allocation2], 4
      %s18 = int_to_ptr.vmem [resolvable:$true] %s17
      %23 = dma.hbm_to_vmem [thread:$0]  %s1, 768, %s18, [#allocation3], 256, 256, 16
    $region9: #{tpu_custom_call.1} parent=1 // pred_fallthru
      _
    // Predicated region
    $region10: #{tpu_custom_call.1} parent=1 // pred_check
      _
    $region11: #{tpu_custom_call.1} parent=1 // pred_check_branch
      %25 = sbr.rel (0) target = $region13
    $region12: #{tpu_custom_call.1} parent=1 // pred_region
      _
    $region13: #{tpu_custom_call.1} parent=1 // pred_fallthru
      _
    // Predicated region
    $region14: #{tpu_custom_call.1} parent=1 // pred_check
      _
    $region15: #{tpu_custom_call.1} parent=1 // pred_check_branch
      %27 = sbr.rel (0) target = $region17
    $region16: #{tpu_custom_call.1} parent=1 // pred_region
      %28 = dma.done [#allocation3], 768
    $region17: #{tpu_custom_call.1} parent=1 // pred_fallthru
      _
    %v30 = vld [vmem:[%s0] sm:$0xf]
    %v31 = vld [vmem:[%s0 + $0x4] sm:$0xf]
    %v32 = vld [vmem:[#allocation2] sm:$0xff]
    %v33 = vld [vmem:[#allocation2 + $0x8] sm:$0xff]
    %v34 = vld [vmem:[#allocation2 + $0x10] sm:$0xff]
    %v35 = vld [vmem:[#allocation2 + $0x18] sm:$0xff]
    %v36 = vld [vmem:[#allocation2 + $0x20] sm:$0x11]
    %v37 = vld [vmem:[#allocation2 + $0x28] sm:$0x11]
    %v38 = vld [vmem:[%s2] sm:$0xff]
    %v39 = vld [vmem:[%s2 + $0x8] sm:$0xff]
    %41 = vset.pattern.permute.xlu0 0
    %42 = vperm.xlu0 %41, %v38
    %v43 = vpop.permute.xlu0 %42
    %46 = vset.pattern.permute.xlu0 0
    %47 = vperm.xlu0 %46, %v39
    %v48 = vpop.permute.xlu0 %47
    %v52 = vunpack.c.l.b16 %v30
    %v53 = vunpack.c.l.b16 %v31
    %v54 = vpack.c.b16 %v53, %v52
    %v61 = vunpack.c.l.b16 %v32
    %v62 = vunpack.c.h.b16 %v32
    %v63 = vunpack.c.l.b16 %v33
    %v64 = vunpack.c.h.b16 %v33
    %v65 = vunpack.c.l.b16 %v34
    %v66 = vunpack.c.h.b16 %v34
    %v67 = vunpack.c.l.b16 %v35
    %v68 = vunpack.c.h.b16 %v35
    %v69 = vunpack.c.l.b16 %v36
    %v70 = vunpack.c.h.b16 %v36
    %v71 = vunpack.c.l.b16 %v37
    %v72 = vunpack.c.h.b16 %v37
    %v73 = vpack.c.b16 %v65, %v61
    %v74 = vpack.c.b16 %v66, %v62
    %v75 = vpack.c.b16 %v67, %v63
    %v76 = vpack.c.b16 %v68, %v64
    %v77 = vpack.c.b16 %v69, %v69
    %v78 = vpack.c.b16 %v70, %v70
    %v79 = vpack.c.b16 %v71, %v71
    %v80 = vpack.c.b16 %v72, %v72
    %vm85 = vcmask 146432
    %v87 = vsel %vm85, %v54, 0
    %vm89 = vcmask 1040384
    %v91 = vsel %vm89, %v77, 0
    %v94 = vsel %vm89, %v78, 0
    %v97 = vsel %vm89, %v79, 0
    %v100 = vsel %vm89, %v80, 0
    %102 = vmatprep.subr.bf16.mxu0 0
    %103 = vmatpush1.bf16.msra.mxu0 0
    %104 = vmatprep.subr.bf16.mxu0 0
    %105 = vmatpush1.bf16.msra.mxu0 0
    %106 = vmatprep.subr.bf16.mxu0 0
    %107 = vmatpush1.bf16.msra.mxu0 0
    %108 = vmatprep.subr.bf16.mxu0 0
    %109 = vmatpush1.bf16.msra.mxu0 0
    %110 = vmatprep.subr.bf16.mxu0 0
    %111 = vmatpush1.bf16.msra.mxu0 0
    %112 = vmatprep.subr.bf16.mxu0 0
    %113 = vmatpush1.bf16.msra.mxu0 0
    %114 = vmatprep.subr.bf16.mxu0 %v94
    %115 = vmatpush1.bf16.msra.mxu0 %v91
    %116 = vmatprep.subr.bf16.mxu0 %v74
    %117 = vmatpush1.bf16.msra.mxu0 %v73
    %118 = vmatprep.subr.bf16.mxu0 0
    %119 = vmatpush2.bf16.msra.mxu0 0
    %120 = vmatprep.subr.bf16.mxu0 0
    %121 = vmatpush2.bf16.msra.mxu0 0
    %122 = vmatprep.subr.bf16.mxu0 0
    %123 = vmatpush2.bf16.msra.mxu0 0
    %124 = vmatprep.subr.bf16.mxu0 0
    %125 = vmatpush2.bf16.msra.mxu0 0
    %126 = vmatprep.subr.bf16.mxu0 0
    %127 = vmatpush2.bf16.msra.mxu0 0
    %128 = vmatprep.subr.bf16.mxu0 0
    %129 = vmatpush2.bf16.msra.mxu0 0
    %130 = vmatprep.subr.bf16.mxu0 0
    %131 = vmatpush2.bf16.msra.mxu0 0
    %132 = vmatprep.subr.bf16.mxu0 0
    %133 = vmatpush2.bf16.msra.mxu0 0
    %134 = vmatprep.mubr.bf16.mxu0 0
    %135 = vmatmul.mubr.bf16.gmra.mxu0 %v87
    %v136 = vpop.f32.mrf.mxu0
    %v137 = vadd.f32 %v43, %v136
    %v138 = vpop.f32.mrf.mxu0
    %v139 = vadd.f32 %v43, %v138
    %v140 = vpop.f32.mrf.mxu0
    %v141 = vadd.f32 %v48, %v140
    %v142 = vpop.f32.mrf.mxu0
    %v143 = vadd.f32 %v48, %v142
    %144 = vdwg.mxu0
    %145 = vmatprep.subr.bf16.mxu0 0
    %146 = vmatpush1.bf16.msra.mxu0 0
    %147 = vmatprep.subr.bf16.mxu0 0
    %148 = vmatpush1.bf16.msra.mxu0 0
    %149 = vmatprep.subr.bf16.mxu0 0
    %150 = vmatpush1.bf16.msra.mxu0 0
    %151 = vmatprep.subr.bf16.mxu0 0
    %152 = vmatpush1.bf16.msra.mxu0 0
    %153 = vmatprep.subr.bf16.mxu0 0
    %154 = vmatpush1.bf16.msra.mxu0 0
    %155 = vmatprep.subr.bf16.mxu0 0
    %156 = vmatpush1.bf16.msra.mxu0 0
    %157 = vmatprep.subr.bf16.mxu0 %v100
    %158 = vmatpush1.bf16.msra.mxu0 %v97
    %159 = vmatprep.subr.bf16.mxu0 %v76
    %160 = vmatpush1.bf16.msra.mxu0 %v75
    %161 = vmatprep.subr.bf16.mxu0 0
    %162 = vmatpush2.bf16.msra.mxu0 0
    %163 = vmatprep.subr.bf16.mxu0 0
    %164 = vmatpush2.bf16.msra.mxu0 0
    %165 = vmatprep.subr.bf16.mxu0 0
    %166 = vmatpush2.bf16.msra.mxu0 0
    %167 = vmatprep.subr.bf16.mxu0 0
    %168 = vmatpush2.bf16.msra.mxu0 0
    %169 = vmatprep.subr.bf16.mxu0 0
    %170 = vmatpush2.bf16.msra.mxu0 0
    %171 = vmatprep.subr.bf16.mxu0 0
    %172 = vmatpush2.bf16.msra.mxu0 0
    %173 = vmatprep.subr.bf16.mxu0 0
    %174 = vmatpush2.bf16.msra.mxu0 0
    %175 = vmatprep.subr.bf16.mxu0 0
    %176 = vmatpush2.bf16.msra.mxu0 0
    %177 = vmatprep.mubr.bf16.mxu0 0
    %178 = vmatmul.mubr.bf16.gmra.mxu0 %v87
    %v179 = vpop.f32.mrf.mxu0
    %v180 = vadd.f32 %v43, %v179
    %v181 = vpop.f32.mrf.mxu0
    %v182 = vadd.f32 %v43, %v181
    %v183 = vpop.f32.mrf.mxu0
    %v184 = vadd.f32 %v48, %v183
    %v185 = vpop.f32.mrf.mxu0
    %v186 = vadd.f32 %v48, %v185
    %187 = vdwg.mxu0
    %v188 = vmax.f32 %v137, 0.0
    %v189 = vmax.f32 %v139, 0.0
    %v190 = vmax.f32 %v180, 0.0
    %v191 = vmax.f32 %v182, 0.0
    %v192 = vmax.f32 %v141, 0.0
    %v193 = vmax.f32 %v143, 0.0
    %v194 = vmax.f32 %v184, 0.0
    %v195 = vmax.f32 %v186, 0.0
    %v196 = vpack.c.bf16 %v192, %v188
    %v197 = vpack.c.bf16 %v193, %v189
    %v198 = vpack.c.bf16 %v194, %v190
    %v199 = vpack.c.bf16 %v195, %v191
    %v204 = vunpack.c.l.b16 %v196
    %v205 = vunpack.c.l.b16 %v197
    %v206 = vunpack.c.l.b16 %v198
    %v207 = vunpack.c.l.b16 %v199
    %v208 = vunpack.c.h.b16 %v196
    %v209 = vunpack.c.h.b16 %v197
    %v210 = vunpack.c.h.b16 %v198
    %v211 = vunpack.c.h.b16 %v199
    %v212 = vpack.c.b16 %v205, %v204
    %v213 = vpack.c.b16 %v207, %v206
    %v214 = vpack.c.b16 %v209, %v208
    %v215 = vpack.c.b16 %v211, %v210
    %220 = vst [vmem:[#allocation5] sm:$0xff] %v212
    %221 = vst [vmem:[#allocation5 + $0x8] sm:$0xff] %v213
    %222 = vst [vmem:[#allocation5 + $0x10] sm:$0xff] %v214
    %223 = vst [vmem:[#allocation5 + $0x18] sm:$0xff] %v215
    // Predicated region
    $region18: #{tpu_custom_call.1} parent=1 // pred_check
      _
    $region19: #{tpu_custom_call.1} parent=1 // pred_check_branch
      %225 = sbr.rel (0) target = $region21
    $region20: #{tpu_custom_call.1} parent=1 // pred_region
      %s227 = ssub.s32 512, 512
      %228 = vsyncadd [#allocation4], %s227
      %s229 = sshll.u32 [#allocation5], 4
      %s230 = int_to_ptr.vmem [resolvable:$true] %s229
      %235 = dma.vmem_to_hbm [thread:$0]  %s230, 512, %s3, [#allocation4], 256, 256, 16
    $region21: #{tpu_custom_call.1} parent=1 // pred_fallthru
      _
    // Predicated region
    $region22: #{tpu_custom_call.1} parent=1 // pred_check
      _
    $region23: #{tpu_custom_call.1} parent=1 // pred_check_branch
      %237 = sbr.rel (0) target = $region25
    $region24: #{tpu_custom_call.1} parent=1 // pred_region
      %238 = dma.done [#allocation4], 512
    $region25: #{tpu_custom_call.1} parent=1 // pred_fallthru
      _
    %239 = vsyncpa [#allocation3], 1
    %240 = vsyncpa [#allocation4], 1

// kernel: tpu_custom_call.1
$region0: #{tpu_custom_call.1}
  #allocation0 [shape = 'u32[]', space=smem, size = 0x4, offset = 0x4, fixed_abs, tag = 'smem constant byte address 0x4 - core index']
  #allocation1 [shape = 'u32[144,128]{1,0:T(1,128)}', space=vmem, size = 0x12000, scoped, tag = 'internal scratch']
  %s0 = inlined_call_operand.vmem [shape: bf16[16,18], index: 0, kind: input, shape index: {}]
  %s1 = inlined_call_operand.hbm [shape: bf16[18,512], index: 1, kind: input, shape index: {}]
  %s2 = inlined_call_operand.vmem [shape: f32[16,1], index: 2, kind: input, shape index: {}]
  %s3 = inlined_call_operand.hbm [shape: bf16[16,512], index: 3, kind: output, shape index: {}]
  %s4 = sld [smem:[#allocation0]]
  $region26: #{tpu_custom_call.1} parent=0
    _
  %s6 = ssub.s32 1, %s4
  %s7 = scalar_select 0, %s6, %s4
  $region1: #{tpu_custom_call.1} parent=0
    #allocation2 [shape = 'u8[24576]{0}', space=vmem, size = 0x6000, scoped, tag = 'input window, operand 1, single buffered']
    #allocation3 [shape = 's32[1]{0}', space=sflag, size = 0x4, scoped, tag = 'scoped memory for tpu_custom_call.1']
    #allocation4 [shape = 's32[1]{0}', space=sflag, size = 0x4, scoped, tag = 'scoped memory for tpu_custom_call.1']
    #allocation5 [shape = 'u8[16384]{0}', space=vmem, size = 0x4000, scoped, tag = 'output window, operand 0, single buffered']
    %8 = vsyncpa [#allocation3], 0
    %9 = vsyncpa [#allocation4], 0
    // Predicated region
    $region2: #{tpu_custom_call.1} parent=1 // pred_check
      _
    $region3: #{tpu_custom_call.1} parent=1 // pred_check_branch
      %11 = sbr.rel (0) target = $region5
    $region4: #{tpu_custom_call.1} parent=1 // pred_region
      _
    $region5: #{tpu_custom_call.1} parent=1 // pred_fallthru
      _
    // Predicated region
    $region6: #{tpu_custom_call.1} parent=1 // pred_check
      _
    $region7: #{tpu_custom_call.1} parent=1 // pred_check_branch
      %13 = sbr.rel (0) target = $region9
    $region8: #{tpu_custom_call.1} parent=1 // pred_region
      %s15 = ssub.s32 768, 768
      %16 = vsyncadd [#allocation3], %s15
      %s17 = sshll.u32 [#allocation2], 4
      %s18 = int_to_ptr.vmem [resolvable:$true] %s17
      %23 = dma.hbm_to_vmem [thread:$0]  %s1, 768, %s18, [#allocation3], 256, 256, 16
    $region9: #{tpu_custom_call.1} parent=1 // pred_fallthru
      _
    // Predicated region
    $region10: #{tpu_custom_call.1} parent=1 // pred_check
      _
    $region11: #{tpu_custom_call.1} parent=1 // pred_check_branch
      %25 = sbr.rel (0) target = $region13
    $region12: #{tpu_custom_call.1} parent=1 // pred_region
      _
    $region13: #{tpu_custom_call.1} parent=1 // pred_fallthru
      _
    // Predicated region
    $region14: #{tpu_custom_call.1} parent=1 // pred_check
      _
    $region15: #{tpu_custom_call.1} parent=1 // pred_check_branch
      %27 = sbr.rel (0) target = $region17
    $region16: #{tpu_custom_call.1} parent=1 // pred_region
      %28 = dma.done [#allocation3], 768
    $region17: #{tpu_custom_call.1} parent=1 // pred_fallthru
      _
    %v30 = vld [vmem:[%s0] sm:$0xf]
    %v31 = vld [vmem:[%s0 + $0x4] sm:$0xf]
    %v32 = vld [vmem:[#allocation2] sm:$0xff]
    %v33 = vld [vmem:[#allocation2 + $0x8] sm:$0xff]
    %v34 = vld [vmem:[#allocation2 + $0x10] sm:$0xff]
    %v35 = vld [vmem:[#allocation2 + $0x18] sm:$0xff]
    %v36 = vld [vmem:[#allocation2 + $0x20] sm:$0x11]
    %v37 = vld [vmem:[#allocation2 + $0x28] sm:$0x11]
    %v38 = vld [vmem:[%s2] sm:$0xff]
    %v39 = vld [vmem:[%s2 + $0x8] sm:$0xff]
    %41 = vset.pattern.permute.xlu0 0
    %42 = vperm.xlu0 %41, %v38
    %v43 = vpop.permute.xlu0 %42
    %46 = vset.pattern.permute.xlu0 0
    %47 = vperm.xlu0 %46, %v39
    %v48 = vpop.permute.xlu0 %47
    %v52 = vunpack.c.l.b16 %v30
    %v53 = vunpack.c.l.b16 %v31
    %v54 = vpack.c.b16 %v53, %v52
    %v61 = vunpack.c.l.b16 %v32
    %v62 = vunpack.c.h.b16 %v32
    %v63 = vunpack.c.l.b16 %v33
    %v64 = vunpack.c.h.b16 %v33
    %v65 = vunpack.c.l.b16 %v34
    %v66 = vunpack.c.h.b16 %v34
    %v67 = vunpack.c.l.b16 %v35
    %v68 = vunpack.c.h.b16 %v35
    %v69 = vunpack.c.l.b16 %v36
    %v70 = vunpack.c.h.b16 %v36
    %v71 = vunpack.c.l.b16 %v37
    %v72 = vunpack.c.h.b16 %v37
    %v73 = vpack.c.b16 %v65, %v61
    %v74 = vpack.c.b16 %v66, %v62
    %v75 = vpack.c.b16 %v67, %v63
    %v76 = vpack.c.b16 %v68, %v64
    %v77 = vpack.c.b16 %v69, %v69
    %v78 = vpack.c.b16 %v70, %v70
    %v79 = vpack.c.b16 %v71, %v71
    %v80 = vpack.c.b16 %v72, %v72
    %vm85 = vcmask 146432
    %v87 = vsel %vm85, %v54, 0
    %vm89 = vcmask 1040384
    %v91 = vsel %vm89, %v77, 0
    %v94 = vsel %vm89, %v78, 0
    %v97 = vsel %vm89, %v79, 0
    %v100 = vsel %vm89, %v80, 0
    %102 = vmatprep.subr.bf16.mxu0 0
    %103 = vmatpush1.bf16.msra.mxu0 0
    %104 = vmatprep.subr.bf16.mxu0 0
    %105 = vmatpush1.bf16.msra.mxu0 0
    %106 = vmatprep.subr.bf16.mxu0 0
    %107 = vmatpush1.bf16.msra.mxu0 0
    %108 = vmatprep.subr.bf16.mxu0 0
    %109 = vmatpush1.bf16.msra.mxu0 0
    %110 = vmatprep.subr.bf16.mxu0 0
    %111 = vmatpush1.bf16.msra.mxu0 0
    %112 = vmatprep.subr.bf16.mxu0 0
    %113 = vmatpush1.bf16.msra.mxu0 0
    %114 = vmatprep.subr.bf16.mxu0 %v94
    %115 = vmatpush1.bf16.msra.mxu0 %v91
    %116 = vmatprep.subr.bf16.mxu0 %v74
    %117 = vmatpush1.bf16.msra.mxu0 %v73
    %118 = vmatprep.subr.bf16.mxu0 0
    %119 = vmatpush2.bf16.msra.mxu0 0
    %120 = vmatprep.subr.bf16.mxu0 0
    %121 = vmatpush2.bf16.msra.mxu0 0
    %122 = vmatprep.subr.bf16.mxu0 0
    %123 = vmatpush2.bf16.msra.mxu0 0
    %124 = vmatprep.subr.bf16.mxu0 0
    %125 = vmatpush2.bf16.msra.mxu0 0
    %126 = vmatprep.subr.bf16.mxu0 0
    %127 = vmatpush2.bf16.msra.mxu0 0
    %128 = vmatprep.subr.bf16.mxu0 0
    %129 = vmatpush2.bf16.msra.mxu0 0
    %130 = vmatprep.subr.bf16.mxu0 0
    %131 = vmatpush2.bf16.msra.mxu0 0
    %132 = vmatprep.subr.bf16.mxu0 0
    %133 = vmatpush2.bf16.msra.mxu0 0
    %134 = vmatprep.mubr.bf16.mxu0 0
    %135 = vmatmul.mubr.bf16.gmra.mxu0 %v87
    %v136 = vpop.f32.mrf.mxu0
    %v137 = vadd.f32 %v43, %v136
    %v138 = vpop.f32.mrf.mxu0
    %v139 = vadd.f32 %v43, %v138
    %v140 = vpop.f32.mrf.mxu0
    %v141 = vadd.f32 %v48, %v140
    %v142 = vpop.f32.mrf.mxu0
    %v143 = vadd.f32 %v48, %v142
    %144 = vdwg.mxu0
    %145 = vmatprep.subr.bf16.mxu0 0
    %146 = vmatpush1.bf16.msra.mxu0 0
    %147 = vmatprep.subr.bf16.mxu0 0
    %148 = vmatpush1.bf16.msra.mxu0 0
    %149 = vmatprep.subr.bf16.mxu0 0
    %150 = vmatpush1.bf16.msra.mxu0 0
    %151 = vmatprep.subr.bf16.mxu0 0
    %152 = vmatpush1.bf16.msra.mxu0 0
    %153 = vmatprep.subr.bf16.mxu0 0
    %154 = vmatpush1.bf16.msra.mxu0 0
    %155 = vmatprep.subr.bf16.mxu0 0
    %156 = vmatpush1.bf16.msra.mxu0 0
    %157 = vmatprep.subr.bf16.mxu0 %v100
    %158 = vmatpush1.bf16.msra.mxu0 %v97
    %159 = vmatprep.subr.bf16.mxu0 %v76
    %160 = vmatpush1.bf16.msra.mxu0 %v75
    %161 = vmatprep.subr.bf16.mxu0 0
    %162 = vmatpush2.bf16.msra.mxu0 0
    %163 = vmatprep.subr.bf16.mxu0 0
    %164 = vmatpush2.bf16.msra.mxu0 0
    %165 = vmatprep.subr.bf16.mxu0 0
    %166 = vmatpush2.bf16.msra.mxu0 0
    %167 = vmatprep.subr.bf16.mxu0 0
    %168 = vmatpush2.bf16.msra.mxu0 0
    %169 = vmatprep.subr.bf16.mxu0 0
    %170 = vmatpush2.bf16.msra.mxu0 0
    %171 = vmatprep.subr.bf16.mxu0 0
    %172 = vmatpush2.bf16.msra.mxu0 0
    %173 = vmatprep.subr.bf16.mxu0 0
    %174 = vmatpush2.bf16.msra.mxu0 0
    %175 = vmatprep.subr.bf16.mxu0 0
    %176 = vmatpush2.bf16.msra.mxu0 0
    %177 = vmatprep.mubr.bf16.mxu0 0
    %178 = vmatmul.mubr.bf16.gmra.mxu0 %v87
    %v179 = vpop.f32.mrf.mxu0
    %v180 = vadd.f32 %v43, %v179
    %v181 = vpop.f32.mrf.mxu0
    %v182 = vadd.f32 %v43, %v181
    %v183 = vpop.f32.mrf.mxu0
    %v184 = vadd.f32 %v48, %v183
    %v185 = vpop.f32.mrf.mxu0
    %v186 = vadd.f32 %v48, %v185
    %187 = vdwg.mxu0
    %v188 = vmax.f32 %v137, 0.0
    %v189 = vmax.f32 %v139, 0.0
    %v190 = vmax.f32 %v180, 0.0
    %v191 = vmax.f32 %v182, 0.0
    %v192 = vmax.f32 %v141, 0.0
    %v193 = vmax.f32 %v143, 0.0
    %v194 = vmax.f32 %v184, 0.0
    %v195 = vmax.f32 %v186, 0.0
    %v196 = vpack.c.bf16 %v192, %v188
    %v197 = vpack.c.bf16 %v193, %v189
    %v198 = vpack.c.bf16 %v194, %v190
    %v199 = vpack.c.bf16 %v195, %v191
    %v204 = vunpack.c.l.b16 %v196
    %v205 = vunpack.c.l.b16 %v197
    %v206 = vunpack.c.l.b16 %v198
    %v207 = vunpack.c.l.b16 %v199
    %v208 = vunpack.c.h.b16 %v196
    %v209 = vunpack.c.h.b16 %v197
    %v210 = vunpack.c.h.b16 %v198
    %v211 = vunpack.c.h.b16 %v199
    %v212 = vpack.c.b16 %v205, %v204
    %v213 = vpack.c.b16 %v207, %v206
    %v214 = vpack.c.b16 %v209, %v208
    %v215 = vpack.c.b16 %v211, %v210
    %220 = vst [vmem:[#allocation5] sm:$0xff] %v212
    %221 = vst [vmem:[#allocation5 + $0x8] sm:$0xff] %v213
    %222 = vst [vmem:[#allocation5 + $0x10] sm:$0xff] %v214
    %223 = vst [vmem:[#allocation5 + $0x18] sm:$0xff] %v215
    // Predicated region
    $region18: #{tpu_custom_call.1} parent=1 // pred_check
      _
    $region19: #{tpu_custom_call.1} parent=1 // pred_check_branch
      %225 = sbr.rel (0) target = $region21
    $region20: #{tpu_custom_call.1} parent=1 // pred_region
      %s227 = ssub.s32 512, 512
      %228 = vsyncadd [#allocation4], %s227
      %s229 = sshll.u32 [#allocation5], 4
      %s230 = int_to_ptr.vmem [resolvable:$true] %s229
      %235 = dma.vmem_to_hbm [thread:$0]  %s230, 512, %s3, [#allocation4], 256, 256, 16
    $region21: #{tpu_custom_call.1} parent=1 // pred_fallthru
      _
    // Predicated region
    $region22: #{tpu_custom_call.1} parent=1 // pred_check
      _
    $region23: #{tpu_custom_call.1} parent=1 // pred_check_branch
      %237 = sbr.rel (0) target = $region25
    $region24: #{tpu_custom_call.1} parent=1 // pred_region
      %238 = dma.done [#allocation4], 512
    $region25: #{tpu_custom_call.1} parent=1 // pred_fallthru
      _
    %239 = vsyncpa [#allocation3], 1
    %240 = vsyncpa [#allocation4], 1

</llo_original>
